<compile_context>
chip_gen: v7x
topology: tpu7x:2x2x1
jax: 0.10.0
libtpu: 0.0.40
codegen_flags: <defaults>
</compile_context>

<pallas_src>
import jax
import jax.numpy as jnp
from jax import lax
from jax.experimental import pallas as pl
from jax.experimental.pallas import tpu as pltpu


def _argmax_dim1_kernel(x_ref, o_ref):
    # x_ref block: (TB, D1, TD2); o_ref block: (TB, 1, TD2)
    x = x_ref[...]                                             # (TB, D1, TD2)
    d1 = x.shape[1]
    # Row index of every element along the reduction (dim1) axis.
    ids = lax.broadcasted_iota(jnp.int32, x.shape, 1)          # (TB, D1, TD2)
    # Max over dim1 (per lane / per dim2 column).
    max_val = jnp.max(x, axis=1, keepdims=True)                # (TB, 1, TD2)
    # First occurrence of the max: keep row id where equal to max, else a
    # large sentinel, then take the minimum id (matches the CUDA kernel's
    # strict-greater update rule: first max wins).
    is_max = x == max_val
    idx = jnp.min(jnp.where(is_max, ids, jnp.int32(d1)), axis=1)   # (TB, TD2)
    # NaN guard: a column whose max is NaN matches nothing -> sentinel d1.
    # Clamp so we never emit an out-of-range index.
    idx = jnp.minimum(idx, jnp.int32(d1 - 1))
    o_ref[:, 0, :] = idx


def _choose_tiles(B, D1, D2, itemsize=4, target_bytes=8 * 1024 * 1024):
    """Pick (TB, TD2) so the input block is ~target_bytes and tiling-legal."""
    # Lane (dim2) tiling: a multiple of 128 that divides D2, or full D2.
    if D2 % 128 != 0:
        td2 = D2
    else:
        cands = [c for c in range(128, D2 + 1, 128) if D2 % c == 0]
        fitting = [c for c in cands if D1 * c * itemsize <= target_bytes]
        td2 = max(fitting) if fitting else min(cands)

    # Batch tiling: any divisor of B (output batch dim is a free leading dim),
    # filling toward target_bytes.
    per_batch = D1 * td2 * itemsize
    max_tb = max(1, target_bytes // per_batch)
    tb = max(d for d in range(1, B + 1) if B % d == 0 and d <= max_tb)
    return tb, td2


def argmax_dim1(x: jax.Array) -> jax.Array:
    """Argmax over dim 1 of a [B, D1, D2] array. Returns [B, D2] int32."""
    assert x.ndim == 3, "expected [batch, dim1, dim2]"
    B, D1, D2 = x.shape
    tb, td2 = _choose_tiles(B, D1, D2)
    grid = (B // tb, D2 // td2)

    out = pl.pallas_call(
        _argmax_dim1_kernel,
        out_shape=jax.ShapeDtypeStruct((B, 1, D2), jnp.int32),
        grid_spec=pltpu.PrefetchScalarGridSpec(
            num_scalar_prefetch=0,
            grid=grid,
            in_specs=[
                pl.BlockSpec((tb, D1, td2), lambda b, j: (b, 0, j)),
            ],
            out_specs=pl.BlockSpec((tb, 1, td2), lambda b, j: (b, 0, j)),
        ),
        compiler_params=pltpu.CompilerParams(
            dimension_semantics=("parallel", "parallel"),
            # ~8 MiB input block * 2 buffers + small output; safe on v5e/v6e
            # (128 MiB physical) and under v7x's 64 MiB physical VMEM.
            vmem_limit_bytes=48 * 1024 * 1024,
        ),
    )(x)
    return out.reshape(B, D2)


class ModelNew:
    """JAX/Pallas equivalent of the PyTorch ModelNew (argmax over dim=1)."""

    def __init__(self, dim: int):
        assert dim == 1, "This implementation only supports argmax over dimension 1."
        self.dim = dim

    def __call__(self, x: jax.Array) -> jax.Array:
        return argmax_dim1(x)


if __name__ == "__main__":
    key = jax.random.PRNGKey(0)

    # Primary small example consistent with the module's [B, D1, D2] forward.
    B, D1, D2 = 2, 16, 256
    x = jax.random.normal(key, (B, D1, D2), dtype=jnp.float32)

    model = ModelNew(dim=1)
    y = model(x)
    y = jax.block_until_ready(y)

    ref = jnp.argmax(x, axis=1).astype(jnp.int32)
    assert y.shape == (B, D2), y.shape
    assert bool(jnp.all(y == ref)), "mismatch vs jnp.argmax reference (small)"

    # Second shape exercising the (batch-chunk, dim2-chunk) tiling path.
    key2 = jax.random.PRNGKey(1)
    x2 = jax.random.normal(key2, (4, 64, 512), dtype=jnp.float32)
    y2 = jax.block_until_ready(model(x2))
    ref2 = jnp.argmax(x2, axis=1).astype(jnp.int32)
    assert y2.shape == (4, 512), y2.shape
    assert bool(jnp.all(y2 == ref2)), "mismatch vs jnp.argmax reference (tiled)"

    print("KERNEL_OK")
</pallas_src>

<mosaic_0001>
module attributes {stable_mosaic.version = 11 : i64} {
  func.func @_argmax_dim1_kernel(%arg0: i32, %arg1: i32, %arg2: memref<2x16x256xf32, #tpu.memory_space<vmem>>, %arg3: memref<2x1x256xi32, #tpu.memory_space<vmem>>) attributes {dimension_semantics = [#tpu.dimension_semantics<parallel>, #tpu.dimension_semantics<parallel>], iteration_bounds = array<i64: 1, 1>, scalar_prefetch = 0 : i64, scratch_operands = 0 : i64, tpu.core_type = #tpu.core_type<tc>, window_params = [{transform_indices = @transform_0, window_bounds = array<i64: 2, 16, 256>}, {transform_indices = @transform_1, window_bounds = array<i64: 2, 1, 256>}]} {
    %c0 = arith.constant 0 : index
    %c0_0 = arith.constant 0 : index
    %c0_1 = arith.constant 0 : index
    %0 = vector.load %arg2[%c0, %c0_0, %c0_1] : memref<2x16x256xf32, #tpu.memory_space<vmem>>, vector<2x16x256xf32>
    %1 = tpu.iota {dimensions = array<i32: 1>} : vector<2x16x256xi32>
    %cst = arith.constant dense<0xFF800000> : vector<2x256xf32>
    %2 = vector.multi_reduction <maximumf>, %0, %cst [1] : vector<2x16x256xf32> to vector<2x256xf32>
    %3 = vector.shape_cast %2 : vector<2x256xf32> to vector<2x1x256xf32>
    %4 = vector.broadcast %3 : vector<2x1x256xf32> to vector<2x16x256xf32>
    %5 = arith.cmpf oeq, %0, %4 : vector<2x16x256xf32>
    %c16_i32 = arith.constant 16 : i32
    %6 = vector.broadcast %c16_i32 : i32 to vector<2x16x256xi32>
    %7 = arith.select %5, %1, %6 : vector<2x16x256xi1>, vector<2x16x256xi32>
    %cst_2 = arith.constant dense<2147483647> : vector<2x256xi32>
    %8 = vector.multi_reduction <minsi>, %7, %cst_2 [1] : vector<2x16x256xi32> to vector<2x256xi32>
    %c15_i32 = arith.constant 15 : i32
    %9 = vector.broadcast %c15_i32 : i32 to vector<2x256xi32>
    %10 = arith.minsi %8, %9 : vector<2x256xi32>
    %c0_3 = arith.constant 0 : index
    %c0_4 = arith.constant 0 : index
    %c0_5 = arith.constant 0 : index
    %11 = vector.load %arg3[%c0_3, %c0_4, %c0_5] : memref<2x1x256xi32, #tpu.memory_space<vmem>>, vector<2x1x256xi32>
    %12 = vector.shape_cast %11 : vector<2x1x256xi32> to vector<2x256xi32>
    %13 = vector.shape_cast %10 : vector<2x256xi32> to vector<2x1x256xi32>
    tpu.vector_store %arg3[%c0_3, %c0_4, %c0_5], %13 {strides = array<i32>} : memref<2x1x256xi32, #tpu.memory_space<vmem>>, vector<2x1x256xi32>,
    return
  }
  func.func @transform_0(%arg0: i32, %arg1: i32) -> (i32, i32, i32) {
    %c0_i32 = arith.constant 0 : i32
    %c0_i32_0 = arith.constant 0 : i32
    return %arg0, %c0_i32, %arg1 : i32, i32, i32
  }
  func.func @transform_1(%arg0: i32, %arg1: i32) -> (i32, i32, i32) {
    %c0_i32 = arith.constant 0 : i32
    %c0_i32_0 = arith.constant 0 : i32
    return %arg0, %c0_i32, %arg1 : i32, i32, i32
  }
}

</mosaic_0001>

<llo_original>
// kernel: tpu_custom_call.1
$region0: #{tpu_custom_call.1}
  #allocation0 [shape = 'u32[]', space=smem, size = 0x4, offset = 0x4, fixed_abs, tag = 'smem constant byte address 0x4 - core index']
  #allocation1 [shape = 'u32[144,128]{1,0:T(1,128)}', space=vmem, size = 0x12000, scoped, tag = 'internal scratch']
  %s0 = inlined_call_operand.hbm [shape: f32[2,16,256], index: 0, kind: input, shape index: {}]
  %s1 = inlined_call_operand.hbm [shape: s32[2,1,256], index: 1, kind: output, shape index: {}]
  %s2 = sld [smem:[#allocation0]]
  $region18: #{tpu_custom_call.1} parent=0
    _
  %s4 = ssub.s32 1, %s2
  %s5 = scalar_select 0, %s4, %s2
  $region1: #{tpu_custom_call.1} parent=0
    #allocation2 [shape = 'u8[32768]{0}', space=vmem, size = 0x8000, scoped, tag = 'input window, operand 0, single buffered']
    #allocation3 [shape = 's32[1]{0}', space=sflag, size = 0x4, scoped, tag = 'scoped memory for tpu_custom_call.1']
    #allocation4 [shape = 's32[1]{0}', space=sflag, size = 0x4, scoped, tag = 'scoped memory for tpu_custom_call.1']
    #allocation5 [shape = 'u8[2048]{0}', space=vmem, size = 0x800, scoped, tag = 'output window, operand 0, single buffered']
    %6 = vsyncpa [#allocation3], 0
    %7 = vsyncpa [#allocation4], 0
    // Predicated region
    $region2: #{tpu_custom_call.1} parent=1 // pred_check
      _
    $region3: #{tpu_custom_call.1} parent=1 // pred_check_branch
      %9 = sbr.rel (0) target = $region5
    $region4: #{tpu_custom_call.1} parent=1 // pred_region
      %s11 = ssub.s32 1024, 1024
      %12 = vsyncadd [#allocation3], %s11
      %s13 = sshll.u32 [#allocation2], 4
      %s14 = int_to_ptr.vmem [resolvable:$true] %s13
      %19 = dma.hbm_to_vmem [thread:$0]  %s0, 1024, %s14, [#allocation3], 256, 256, 16
    $region5: #{tpu_custom_call.1} parent=1 // pred_fallthru
      _
    // Predicated region
    $region6: #{tpu_custom_call.1} parent=1 // pred_check
      _
    $region7: #{tpu_custom_call.1} parent=1 // pred_check_branch
      %21 = sbr.rel (0) target = $region9
    $region8: #{tpu_custom_call.1} parent=1 // pred_region
      %22 = dma.done [#allocation3], 1024
    $region9: #{tpu_custom_call.1} parent=1 // pred_fallthru
      _
    %v23 = vld [vmem:[#allocation2] sm:$0xff]
    %v24 = vld [vmem:[#allocation2 + $0x8] sm:$0xff]
    %v25 = vld [vmem:[#allocation2 + $0x10] sm:$0xff]
    %v26 = vld [vmem:[#allocation2 + $0x18] sm:$0xff]
    %v27 = vld [vmem:[#allocation2 + $0x20] sm:$0xff]
    %v28 = vld [vmem:[#allocation2 + $0x28] sm:$0xff]
    %v29 = vld [vmem:[#allocation2 + $0x30] sm:$0xff]
    %v30 = vld [vmem:[#allocation2 + $0x38] sm:$0xff]
    %v31 = vlaneseq
    %v32 = vshrl.u32 %v31, 7
    %v33 = vadd.s32 %v32, 8
    %v34 = vmax.f32 %v23, %v25
    %v35 = vrot.slane %v34, 4
    %v36 = vmax.f32 %v34, %v35
    %v37 = vrot.slane %v36, 2
    %v38 = vmax.f32 %v36, %v37
    %v39 = vrot.slane %v38, 1
    %v40 = vmax.f32 %v38, %v39
    %v41 = vmax.f32 %v24, %v26
    %v42 = vrot.slane %v41, 4
    %v43 = vmax.f32 %v41, %v42
    %v44 = vrot.slane %v43, 2
    %v45 = vmax.f32 %v43, %v44
    %v46 = vrot.slane %v45, 1
    %v47 = vmax.f32 %v45, %v46
    %v48 = vmax.f32 %v27, %v29
    %v49 = vrot.slane %v48, 4
    %v50 = vmax.f32 %v48, %v49
    %v51 = vrot.slane %v50, 2
    %v52 = vmax.f32 %v50, %v51
    %v53 = vrot.slane %v52, 1
    %v54 = vmax.f32 %v52, %v53
    %v55 = vmax.f32 %v28, %v30
    %v56 = vrot.slane %v55, 4
    %v57 = vmax.f32 %v55, %v56
    %v58 = vrot.slane %v57, 2
    %v59 = vmax.f32 %v57, %v58
    %v60 = vrot.slane %v59, 1
    %v61 = vmax.f32 %v59, %v60
    %vm62 = vcmp.eq.f32.partialorder %v23, %v40
    %vm63 = vcmp.eq.f32.partialorder %v24, %v47
    %vm64 = vcmp.eq.f32.partialorder %v25, %v40
    %vm65 = vcmp.eq.f32.partialorder %v26, %v47
    %vm66 = vcmp.eq.f32.partialorder %v27, %v54
    %vm67 = vcmp.eq.f32.partialorder %v28, %v61
    %vm68 = vcmp.eq.f32.partialorder %v29, %v54
    %vm69 = vcmp.eq.f32.partialorder %v30, %v61
    %v70 = vsel %vm62, %v32, 16
    %v71 = vsel %vm63, %v32, 16
    %v72 = vsel %vm64, %v33, 16
    %v73 = vsel %vm65, %v33, 16
    %v74 = vsel %vm66, %v32, 16
    %v75 = vsel %vm67, %v32, 16
    %v76 = vsel %vm68, %v33, 16
    %v77 = vsel %vm69, %v33, 16
    %vm78 = vcmp.lt.s32.totalorder %v70, %v72
    %v79 = vsel %vm78, %v70, %v72
    %v80 = vrot.slane %v79, 4
    %vm81 = vcmp.lt.s32.totalorder %v79, %v80
    %v82 = vsel %vm81, %v79, %v80
    %v83 = vrot.slane %v82, 2
    %vm84 = vcmp.lt.s32.totalorder %v82, %v83
    %v85 = vsel %vm84, %v82, %v83
    %v86 = vrot.slane %v85, 1
    %vm87 = vcmp.lt.s32.totalorder %v85, %v86
    %v88 = vsel %vm87, %v85, %v86
    %vm89 = vcmp.lt.s32.totalorder %v71, %v73
    %v90 = vsel %vm89, %v71, %v73
    %v91 = vrot.slane %v90, 4
    %vm92 = vcmp.lt.s32.totalorder %v90, %v91
    %v93 = vsel %vm92, %v90, %v91
    %v94 = vrot.slane %v93, 2
    %vm95 = vcmp.lt.s32.totalorder %v93, %v94
    %v96 = vsel %vm95, %v93, %v94
    %v97 = vrot.slane %v96, 1
    %vm98 = vcmp.lt.s32.totalorder %v96, %v97
    %v99 = vsel %vm98, %v96, %v97
    %vm100 = vcmp.lt.s32.totalorder %v74, %v76
    %v101 = vsel %vm100, %v74, %v76
    %v102 = vrot.slane %v101, 4
    %vm103 = vcmp.lt.s32.totalorder %v101, %v102
    %v104 = vsel %vm103, %v101, %v102
    %v105 = vrot.slane %v104, 2
    %vm106 = vcmp.lt.s32.totalorder %v104, %v105
    %v107 = vsel %vm106, %v104, %v105
    %v108 = vrot.slane %v107, 1
    %vm109 = vcmp.lt.s32.totalorder %v107, %v108
    %v110 = vsel %vm109, %v107, %v108
    %vm111 = vcmp.lt.s32.totalorder %v75, %v77
    %v112 = vsel %vm111, %v75, %v77
    %v113 = vrot.slane %v112, 4
    %vm114 = vcmp.lt.s32.totalorder %v112, %v113
    %v115 = vsel %vm114, %v112, %v113
    %v116 = vrot.slane %v115, 2
    %vm117 = vcmp.lt.s32.totalorder %v115, %v116
    %v118 = vsel %vm117, %v115, %v116
    %v119 = vrot.slane %v118, 1
    %vm120 = vcmp.lt.s32.totalorder %v118, %v119
    %v121 = vsel %vm120, %v118, %v119
    %vm122 = vcmp.lt.s32.totalorder %v88, 15
    %v123 = vsel %vm122, %v88, 15
    %vm124 = vcmp.lt.s32.totalorder %v99, 15
    %v125 = vsel %vm124, %v99, 15
    %vm126 = vcmp.lt.s32.totalorder %v110, 15
    %v127 = vsel %vm126, %v110, 15
    %vm128 = vcmp.lt.s32.totalorder %v121, 15
    %v129 = vsel %vm128, %v121, 15
    %v130 = vcombine.low %v123, %v125
    %v132 = vunpack.c.l.s4 1966171168
    %v133 = vunpack.c.0.s8 %v132
    %v134 = vlaneseq
    %v135 = vshrl.u32 %v134, 7
    %v136 = vsub.s32 %v133, %v135
    %v137 = vrot.slane %v130, %v136
    %v139 = vunpack.c.l.s4 1966171168
    %v140 = vunpack.c.0.s8 %v139
    %v141 = vlaneseq
    %v142 = vshrl.u32 %v141, 7
    %v143 = vsub.s32 %v140, %v142
    %v144 = vrot.slane %v137, %v143
    %v145 = vcombine.low %v127, %v129
    %v147 = vunpack.c.l.s4 1966171168
    %v148 = vunpack.c.0.s8 %v147
    %v149 = vlaneseq
    %v150 = vshrl.u32 %v149, 7
    %v151 = vsub.s32 %v148, %v150
    %v152 = vrot.slane %v145, %v151
    %v154 = vunpack.c.l.s4 1966171168
    %v155 = vunpack.c.0.s8 %v154
    %v156 = vlaneseq
    %v157 = vshrl.u32 %v156, 7
    %v158 = vsub.s32 %v155, %v157
    %v159 = vrot.slane %v152, %v158
    %v160 = vlaneseq
    %vm161 = vcmp.ge.s32.totalorder %v160, 0
    %vm162 = vcmp.lt.s32.totalorder %v160, 256
    %vm163 = vmand %vm161, %vm162
    %164 = vst.msk [vmem:[#allocation5] sm:$0x3] %vm163, %v144
    %165 = vst.msk [vmem:[#allocation5 + $0x2] sm:$0x3] %vm163, %v159
    // Predicated region
    $region10: #{tpu_custom_call.1} parent=1 // pred_check
      _
    $region11: #{tpu_custom_call.1} parent=1 // pred_check_branch
      %167 = sbr.rel (0) target = $region13
    $region12: #{tpu_custom_call.1} parent=1 // pred_region
      %s169 = ssub.s32 64, 64
      %170 = vsyncadd [#allocation4], %s169
      %s171 = sshll.u32 [#allocation5], 4
      %s172 = int_to_ptr.vmem [resolvable:$true] %s171
      %177 = dma.vmem_to_hbm [thread:$0]  %s172, 64, %s1, [#allocation4], 32, 32, 2
    $region13: #{tpu_custom_call.1} parent=1 // pred_fallthru
      _
    // Predicated region
    $region14: #{tpu_custom_call.1} parent=1 // pred_check
      _
    $region15: #{tpu_custom_call.1} parent=1 // pred_check_branch
      %179 = sbr.rel (0) target = $region17
    $region16: #{tpu_custom_call.1} parent=1 // pred_region
      %180 = dma.done [#allocation4], 64
    $region17: #{tpu_custom_call.1} parent=1 // pred_fallthru
      _
    %181 = vsyncpa [#allocation3], 1
    %182 = vsyncpa [#allocation4], 1

</llo_original>
